<compile_context>
chip_gen: v5e
topology: v5e:2x2
jax: 0.10.0
libtpu: 0.0.40
codegen_flags: <defaults>
</compile_context>

<pallas_src>
import functools

import jax
import jax.numpy as jnp
from jax import lax
from jax.experimental import pallas as pl
from jax.experimental.pallas import tpu as pltpu


def _round_up(v, m):
    return (v + m - 1) // m * m


# --------------------------------------------------------------------------
# Elementwise tanh pre-pass (used only when the j grid has > 1 block, so the
# activation is never recomputed Np/tn times inside the matmul).
# --------------------------------------------------------------------------
def _tanh_kernel(x_ref, o_ref):
    # tanh on the EUP in f32 (safe on every generation; v5e has no bf16 EUP).
    o_ref[...] = jnp.tanh(x_ref[...].astype(jnp.float32)).astype(o_ref.dtype)


def _tanh_pallas(x_p, out_dtype, tm, tk):
    Bp, Kp = x_p.shape
    return pl.pallas_call(
        _tanh_kernel,
        out_shape=jax.ShapeDtypeStruct((Bp, Kp), out_dtype),
        grid=(Bp // tm, Kp // tk),
        in_specs=[pl.BlockSpec((tm, tk), lambda i, k: (i, k))],
        out_specs=pl.BlockSpec((tm, tk), lambda i, k: (i, k)),
        compiler_params=pltpu.CompilerParams(
            dimension_semantics=("parallel", "parallel")),
    )(x_p)


# --------------------------------------------------------------------------
# Matmul (+ optional fused tanh) kernel: y = act(x) @ W.T + b
# --------------------------------------------------------------------------
def _fc_matmul_kernel(x_ref, w_ref, b_ref, o_ref, acc_ref, *, apply_tanh,
                      mxu_dtype):
    k = pl.program_id(2)

    x = x_ref[...]
    if apply_tanh:
        x = jnp.tanh(x.astype(jnp.float32))
    x = x.astype(mxu_dtype)

    # Weight kept in PyTorch (output_dim, input_dim) layout; contract on dim 1
    # so no wrapper-side transpose/HBM rewrite is needed.
    prod = lax.dot_general(
        x, w_ref[...].astype(mxu_dtype),
        dimension_numbers=(((1,), (1,)), ((), ())),
        preferred_element_type=jnp.float32)

    @pl.when(k == 0)
    def _():
        acc_ref[...] = prod  # direct write: saves the zero-init store + add

    @pl.when(k > 0)
    def _():
        acc_ref[...] += prod

    @pl.when(k == pl.num_programs(2) - 1)
    def _():
        o_ref[...] = (acc_ref[...]
                      + b_ref[...].astype(jnp.float32)).astype(o_ref.dtype)


# --------------------------------------------------------------------------
# FCLayer wrapper: parameters padded / cast once at construction.
# --------------------------------------------------------------------------
class FCLayerPallas:
    """Pallas-TPU port of FCLayer.forward: y = Linear(tanh(Dropout(x)))."""

    def __init__(self, weight, bias, *, use_activation=True, dropout_rate=0.0,
                 mxu_dtype=None, tile_m=None, tile_n=None, tile_k=None):
        # TODO(synk): implement in-kernel dropout (pltpu.prng_*) for rate > 0.
        assert dropout_rate == 0.0, "training-mode dropout not implemented"
        N, K = weight.shape
        assert bias.shape == (N,)
        self.N, self.K = N, K
        self.use_activation = use_activation
        self.mxu_dtype = jnp.dtype(mxu_dtype if mxu_dtype is not None
                                   else weight.dtype)

        # Tile sizes: lane-dense multiples of 128 on N/K, up to 1024x1024x512.
        # ~20 MiB VMEM (double buffered) -> fits v5e/v6e/v7x; raises the
        # kernel's FLOPs/byte past the HBM ridge point on every generation.
        self.tn = tile_n or min(1024, _round_up(N, 128))
        self.tk = tile_k or min(512, _round_up(K, 128))
        self.tile_m = tile_m

        self.Np = _round_up(N, self.tn)
        self.Kp = _round_up(K, self.tk)
        self.grid_j = self.Np // self.tn

        # Pad + cast parameters ONCE (hoisted out of the per-call path).
        w_p = weight
        if (self.Np, self.Kp) != (N, K):
            w_p = jnp.pad(weight, ((0, self.Np - N), (0, self.Kp - K)))
        self.w_p = w_p.astype(self.mxu_dtype)
        b_p = bias if self.Np == N else jnp.pad(bias, (0, self.Np - N))
        self.b2 = b_p.reshape(1, self.Np)

    def __call__(self, x):
        B, K = x.shape
        assert K == self.K
        out_dtype = x.dtype

        tm = self.tile_m or min(1024, _round_up(B, 8))
        # v7x has 2 TensorCores: if the (i, j) grid would be 1x1 for a
        # sizeable batch, split the batch into two i-blocks.
        if (self.tile_m is None and self.grid_j == 1
                and tm >= _round_up(B, 8) and B >= 256):
            tm = _round_up(-(-_round_up(B, 8) // 2), 8)
        Bp = _round_up(B, tm)

        # Zero-pad x (tanh(0)=0 and zero weight rows/cols contribute nothing).
        x_p = x if (Bp == B and self.Kp == K) else jnp.pad(
            x, ((0, Bp - B), (0, self.Kp - K)))

        # tanh exactly once per element.
        fuse_tanh = self.use_activation and self.grid_j == 1
        if self.use_activation and not fuse_tanh:
            x_p = _tanh_pallas(x_p, self.mxu_dtype, tm, self.tk)

        grid = (Bp // tm, self.grid_j, self.Kp // self.tk)

        # VMEM budget for the chosen tiles (2x buffering on pipelined arrays
        # + f32 accumulator), with headroom; capped at 60 MiB (v7x-safe).
        op_b = self.mxu_dtype.itemsize
        x_b = jnp.dtype(x_p.dtype).itemsize
        out_b = jnp.dtype(out_dtype).itemsize
        need = (2 * (tm * self.tk * x_b + self.tn * self.tk * op_b
                     + self.tn * 4 + tm * self.tn * out_b)
                + tm * self.tn * 4)
        vmem_limit = int(min(max(need * 3 // 2 + (8 << 20), 32 << 20),
                             60 << 20))

        kernel = functools.partial(_fc_matmul_kernel,
                                   apply_tanh=fuse_tanh,
                                   mxu_dtype=self.mxu_dtype)

        out_p = pl.pallas_call(
            kernel,
            out_shape=jax.ShapeDtypeStruct((Bp, self.Np), out_dtype),
            grid=grid,
            in_specs=[
                pl.BlockSpec((tm, self.tk), lambda i, j, k: (i, k)),      # x
                pl.BlockSpec((self.tn, self.tk), lambda i, j, k: (j, k)),  # W
                pl.BlockSpec((1, self.tn), lambda i, j, k: (0, j)),        # b
            ],
            out_specs=pl.BlockSpec((tm, self.tn), lambda i, j, k: (i, j)),
            scratch_shapes=[pltpu.VMEM((tm, self.tn), jnp.float32)],
            compiler_params=pltpu.CompilerParams(
                dimension_semantics=("parallel", "parallel", "arbitrary"),
                vmem_limit_bytes=vmem_limit),
            cost_estimate=pl.CostEstimate(
                flops=2 * Bp * self.Kp * self.Np,
                transcendentals=Bp * self.Kp if fuse_tanh else 0,
                bytes_accessed=(Bp * self.Kp * self.grid_j * x_b
                                + self.Np * self.Kp * (Bp // tm) * op_b
                                + self.Np * 4 + Bp * self.Np * out_b)),
        )(x_p, self.w_p, self.b2)

        if Bp != B or self.Np != self.N:
            out_p = out_p[:B, :self.N]
        return out_p


if __name__ == "__main__":
    key = jax.random.PRNGKey(0)

    def make_case(key, batch, input_dim, output_dim, dtype=jnp.float32):
        k_x, k_w, k_b = jax.random.split(key, 3)
        x = jax.random.normal(k_x, (batch, input_dim), dtype=dtype)
        bound = 1.0 / float(input_dim) ** 0.5
        weight = jax.random.uniform(k_w, (output_dim, input_dim),
                                    minval=-bound, maxval=bound, dtype=dtype)
        bias = jax.random.uniform(k_b, (output_dim,),
                                  minval=-bound, maxval=bound, dtype=dtype)
        return x, weight, bias

    def ref_fc(x, w, b):
        xf = jnp.tanh(x.astype(jnp.float32))
        return xf @ w.astype(jnp.float32).T + b.astype(jnp.float32)

    keys = jax.random.split(key, 4)

    # Case 1: small harness shape (N/K padding + slicing, fused tanh, 1 tile).
    x, w, b = make_case(keys[0], batch=8, input_dim=32, output_dim=32)
    layer = FCLayerPallas(w, b, use_activation=True)
    out = jax.block_until_ready(layer(x))
    ref = ref_fc(x, w, b)
    assert out.shape == ref.shape
    assert jnp.allclose(out, ref, atol=1e-4, rtol=1e-4)

    # Case 2: non-aligned shape (padding on every axis).
    x, w, b = make_case(keys[1], batch=20, input_dim=200, output_dim=96)
    layer = FCLayerPallas(w, b)
    out = jax.block_until_ready(layer(x))
    ref = ref_fc(x, w, b)
    assert out.shape == ref.shape
    assert jnp.allclose(out, ref, atol=1e-4, rtol=1e-4)

    # Case 3: forced small tiles -> multi-block (i, j, k) grid; exercises the
    # separate tanh pre-pass (j grid > 1) and the k-axis accumulation.
    x, w, b = make_case(keys[2], batch=16, input_dim=256, output_dim=256)
    layer = FCLayerPallas(w, b, tile_m=8, tile_n=128, tile_k=128)
    out = jax.block_until_ready(layer(x))
    ref = ref_fc(x, w, b)
    assert out.shape == ref.shape
    assert jnp.allclose(out, ref, atol=1e-4, rtol=1e-4)

    # Case 4: bf16 MXU operands (weight cast once at init, tanh output cast
    # before the dot, f32 accumulation) -- the high-throughput configuration.
    x, w, b = make_case(keys[3], batch=32, input_dim=200, output_dim=128)
    layer = FCLayerPallas(w, b, mxu_dtype=jnp.bfloat16)
    out = jax.block_until_ready(layer(x))
    ref = ref_fc(x, w, b)
    assert out.shape == ref.shape
    assert jnp.allclose(out, ref, atol=2e-2, rtol=2e-2)

    print("KERNEL_OK")
</pallas_src>

<mosaic_0001>
module attributes {stable_mosaic.version = 11 : i64} {
  func.func @_fc_matmul_kernel(%arg0: i32, %arg1: i32, %arg2: i32, %arg3: memref<8x128xf32, #tpu.memory_space<vmem>>, %arg4: memref<128x128xf32, #tpu.memory_space<vmem>>, %arg5: memref<1x128xf32, #tpu.memory_space<vmem>>, %arg6: memref<8x128xf32, #tpu.memory_space<vmem>>, %arg7: memref<8x128xf32, #tpu.memory_space<vmem>>) attributes {dimension_semantics = [#tpu.dimension_semantics<parallel>, #tpu.dimension_semantics<parallel>, #tpu.dimension_semantics<arbitrary>], iteration_bounds = array<i64: 1, 1, 1>, scalar_prefetch = 0 : i64, scratch_operands = 1 : i64, tpu.core_type = #tpu.core_type<tc>, window_params = [{transform_indices = @transform_0, window_bounds = array<i64: 8, 128>}, {transform_indices = @transform_1, window_bounds = array<i64: 128, 128>}, {transform_indices = @transform_2, window_bounds = array<i64: 1, 128>}, {transform_indices = @transform_3, window_bounds = array<i64: 8, 128>}]} {
    %c0 = arith.constant 0 : index
    %c0_0 = arith.constant 0 : index
    %0 = vector.load %arg3[%c0, %c0_0] : memref<8x128xf32, #tpu.memory_space<vmem>>, vector<8x128xf32>
    %1 = math.tanh %0 : vector<8x128xf32>
    %c0_1 = arith.constant 0 : index
    %c0_2 = arith.constant 0 : index
    %2 = vector.load %arg4[%c0_1, %c0_2] : memref<128x128xf32, #tpu.memory_space<vmem>>, vector<128x128xf32>
    %cst = arith.constant dense<0.000000e+00> : vector<8x128xf32>
    %3 = tpu.matmul %1, %2, %cst {dimension_numbers = #tpu.dot_dimension_numbers<[1], [1], [0], [0], [0, 0, 1, 0], [], []>} : vector<8x128xf32>, vector<128x128xf32>, vector<8x128xf32> -> vector<8x128xf32>
    %c0_i32 = arith.constant 0 : i32
    %4 = arith.cmpi eq, %arg2, %c0_i32 : i32
    %5 = arith.extui %4 : i1 to i32
    %c0_i32_3 = arith.constant 0 : i32
    %6 = arith.cmpi ne, %5, %c0_i32_3 : i32
    scf.if %6 {
      %c0_8 = arith.constant 0 : index
      %c0_9 = arith.constant 0 : index
      %13 = vector.load %arg7[%c0_8, %c0_9] : memref<8x128xf32, #tpu.memory_space<vmem>>, vector<8x128xf32>
      tpu.vector_store %arg7[%c0_8, %c0_9], %3 {strides = array<i32>} : memref<8x128xf32, #tpu.memory_space<vmem>>, vector<8x128xf32>,
    } else {
    }
    %c0_i32_4 = arith.constant 0 : i32
    %7 = arith.cmpi sgt, %arg2, %c0_i32_4 : i32
    %8 = arith.extui %7 : i1 to i32
    %c0_i32_5 = arith.constant 0 : i32
    %9 = arith.cmpi ne, %8, %c0_i32_5 : i32
    scf.if %9 {
      %c0_8 = arith.constant 0 : index
      %c0_9 = arith.constant 0 : index
      %13 = vector.load %arg7[%c0_8, %c0_9] : memref<8x128xf32, #tpu.memory_space<vmem>>, vector<8x128xf32>
      %14 = arith.addf %13, %3 : vector<8x128xf32>
      %c0_10 = arith.constant 0 : index
      %c0_11 = arith.constant 0 : index
      %15 = vector.load %arg7[%c0_10, %c0_11] : memref<8x128xf32, #tpu.memory_space<vmem>>, vector<8x128xf32>
      tpu.vector_store %arg7[%c0_10, %c0_11], %14 {strides = array<i32>} : memref<8x128xf32, #tpu.memory_space<vmem>>, vector<8x128xf32>,
    } else {
    }
    %c0_i32_6 = arith.constant 0 : i32
    %10 = arith.cmpi eq, %arg2, %c0_i32_6 : i32
    %11 = arith.extui %10 : i1 to i32
    %c0_i32_7 = arith.constant 0 : i32
    %12 = arith.cmpi ne, %11, %c0_i32_7 : i32
    scf.if %12 {
      %c0_8 = arith.constant 0 : index
      %c0_9 = arith.constant 0 : index
      %13 = vector.load %arg7[%c0_8, %c0_9] : memref<8x128xf32, #tpu.memory_space<vmem>>, vector<8x128xf32>
      %c0_10 = arith.constant 0 : index
      %c0_11 = arith.constant 0 : index
      %14 = vector.load %arg5[%c0_10, %c0_11] : memref<1x128xf32, #tpu.memory_space<vmem>>, vector<1x128xf32>
      %15 = vector.broadcast %14 : vector<1x128xf32> to vector<8x128xf32>
      %16 = arith.addf %13, %15 : vector<8x128xf32>
      %c0_12 = arith.constant 0 : index
      %c0_13 = arith.constant 0 : index
      %17 = vector.load %arg6[%c0_12, %c0_13] : memref<8x128xf32, #tpu.memory_space<vmem>>, vector<8x128xf32>
      tpu.vector_store %arg6[%c0_12, %c0_13], %16 {strides = array<i32>} : memref<8x128xf32, #tpu.memory_space<vmem>>, vector<8x128xf32>,
    } else {
    }
    return
  }
  func.func @transform_0(%arg0: i32, %arg1: i32, %arg2: i32) -> (i32, i32) {
    %c0_i32 = arith.constant 0 : i32
    return %arg0, %arg2 : i32, i32
  }
  func.func @transform_1(%arg0: i32, %arg1: i32, %arg2: i32) -> (i32, i32) {
    %c0_i32 = arith.constant 0 : i32
    return %arg1, %arg2 : i32, i32
  }
  func.func @transform_2(%arg0: i32, %arg1: i32, %arg2: i32) -> (i32, i32) {
    %c0_i32 = arith.constant 0 : i32
    %c0_i32_0 = arith.constant 0 : i32
    return %c0_i32, %arg1 : i32, i32
  }
  func.func @transform_3(%arg0: i32, %arg1: i32, %arg2: i32) -> (i32, i32) {
    %c0_i32 = arith.constant 0 : i32
    return %arg0, %arg1 : i32, i32
  }
}

</mosaic_0001>

<llo_original>
// kernel: tpu_custom_call.1
$region0: #{tpu_custom_call.1}
  #allocation0 [shape = 'u32[]', space=smem, size = 0x4, offset = 0x4, fixed_abs, tag = 'smem constant byte address 0x4 - core index']
  #allocation1 [shape = 'u32[72,128]{1,0:T(1,128)}', space=vmem, size = 0x9000, scoped, tag = 'internal scratch']
  #allocation2 [shape = 'f32[8,128]{1,0:T(8,128)}', space=vmem, size = 0x1000, scoped, tag = 'scratch operand']
  %s0 = inlined_call_operand.hbm [shape: f32[8,128], index: 0, kind: input, shape index: {}]
  %s1 = inlined_call_operand.hbm [shape: f32[128,128], index: 1, kind: input, shape index: {}]
  %s2 = inlined_call_operand.vmem [shape: f32[1,128], index: 2, kind: input, shape index: {}]
  %s3 = inlined_call_operand.hbm [shape: f32[8,128], index: 3, kind: output, shape index: {}]
  %s4 = sld [smem:[#allocation0]]
  $region42: #{tpu_custom_call.1} parent=0
    _
  %s6 = ssub.s32 1, %s4
  %s7 = scalar_select 0, %s6, %s4
  $region1: #{tpu_custom_call.1} parent=0
    #allocation3 [shape = 'u8[4096]{0}', space=vmem, size = 0x1000, scoped, tag = 'input window, operand 0, single buffered']
    #allocation4 [shape = 's32[1]{0}', space=sflag, size = 0x4, scoped, tag = 'scoped memory for tpu_custom_call.1']
    #allocation5 [shape = 's32[1]{0}', space=sflag, size = 0x4, scoped, tag = 'scoped memory for tpu_custom_call.1']
    #allocation6 [shape = 'u8[65536]{0}', space=vmem, size = 0x10000, scoped, tag = 'input window, operand 1, single buffered']
    #allocation7 [shape = 's32[1]{0}', space=sflag, size = 0x4, scoped, tag = 'scoped memory for tpu_custom_call.1']
    #allocation8 [shape = 'u8[4096]{0}', space=vmem, size = 0x1000, scoped, tag = 'output window, operand 0, single buffered']
    %8 = vsyncpa [#allocation4], 0
    %9 = vsyncpa [#allocation7], 0
    %10 = vsyncpa [#allocation5], 0
    // Predicated region
    $region2: #{tpu_custom_call.1} parent=1 // pred_check
      _
    $region3: #{tpu_custom_call.1} parent=1 // pred_check_branch
      %12 = sbr.rel (0) target = $region5
    $region4: #{tpu_custom_call.1} parent=1 // pred_region
      %14 = vsyncadd [#allocation4], 0
      %s16 = sshll.u32 %s0, 4
      %s17 = int_to_ptr.hbm [resolvable:$true] %s16
      %s18 = sshll.u32 [#allocation3], 4
      %s19 = int_to_ptr.vmem [resolvable:$true] %s18
      %21 = dma.hbm_to_vmem [thread:$0]  %s17, 128, %s19, [#allocation4]
    $region5: #{tpu_custom_call.1} parent=1 // pred_fallthru
      _
    // Predicated region
    $region6: #{tpu_custom_call.1} parent=1 // pred_check
      _
    $region7: #{tpu_custom_call.1} parent=1 // pred_check_branch
      %23 = sbr.rel (0) target = $region9
    $region8: #{tpu_custom_call.1} parent=1 // pred_region
      %25 = vsyncadd [#allocation7], 0
      %s26 = sshll.u32 %s1, 4
      %s27 = int_to_ptr.hbm [resolvable:$true] %s26
      %s28 = sshll.u32 [#allocation6], 4
      %s29 = int_to_ptr.vmem [resolvable:$true] %s28
      %34 = dma.hbm_to_vmem [thread:$0]  %s27, 2048, %s29, [#allocation7], 128, 128, 8
    $region9: #{tpu_custom_call.1} parent=1 // pred_fallthru
      _
    // Predicated region
    $region10: #{tpu_custom_call.1} parent=1 // pred_check
      _
    $region11: #{tpu_custom_call.1} parent=1 // pred_check_branch
      %36 = sbr.rel (0) target = $region13
    $region12: #{tpu_custom_call.1} parent=1 // pred_region
      _
    $region13: #{tpu_custom_call.1} parent=1 // pred_fallthru
      _
    // Predicated region
    $region14: #{tpu_custom_call.1} parent=1 // pred_check
      _
    $region15: #{tpu_custom_call.1} parent=1 // pred_check_branch
      %38 = sbr.rel (0) target = $region17
    $region16: #{tpu_custom_call.1} parent=1 // pred_region
      %40 = dma.done [#allocation4], 128
    $region17: #{tpu_custom_call.1} parent=1 // pred_fallthru
      _
    // Predicated region
    $region18: #{tpu_custom_call.1} parent=1 // pred_check
      _
    $region19: #{tpu_custom_call.1} parent=1 // pred_check_branch
      %42 = sbr.rel (0) target = $region21
    $region20: #{tpu_custom_call.1} parent=1 // pred_region
      %44 = dma.done [#allocation7], 2048
    $region21: #{tpu_custom_call.1} parent=1 // pred_fallthru
      _
    %v45 = vld [vmem:[#allocation3] sm:$0xff]
    %v46 = vtanh.pop %v45
    %v47 = vld [vmem:[#allocation6] sm:$0xff]
    %v48 = vld [vmem:[#allocation6 + $0x8] sm:$0xff]
    %v49 = vld [vmem:[#allocation6 + $0x10] sm:$0xff]
    %v50 = vld [vmem:[#allocation6 + $0x18] sm:$0xff]
    %v51 = vld [vmem:[#allocation6 + $0x20] sm:$0xff]
    %v52 = vld [vmem:[#allocation6 + $0x28] sm:$0xff]
    %v53 = vld [vmem:[#allocation6 + $0x30] sm:$0xff]
    %v54 = vld [vmem:[#allocation6 + $0x38] sm:$0xff]
    %v55 = vld [vmem:[#allocation6 + $0x40] sm:$0xff]
    %v56 = vld [vmem:[#allocation6 + $0x48] sm:$0xff]
    %v57 = vld [vmem:[#allocation6 + $0x50] sm:$0xff]
    %v58 = vld [vmem:[#allocation6 + $0x58] sm:$0xff]
    %v59 = vld [vmem:[#allocation6 + $0x60] sm:$0xff]
    %v60 = vld [vmem:[#allocation6 + $0x68] sm:$0xff]
    %v61 = vld [vmem:[#allocation6 + $0x70] sm:$0xff]
    %v62 = vld [vmem:[#allocation6 + $0x78] sm:$0xff]
    %63 = vmatpush.xpose.msra.mxu0 %v62
    %64 = vmatpush.xpose.msra.mxu0 %v61
    %65 = vmatpush.xpose.msra.mxu0 %v60
    %66 = vmatpush.xpose.msra.mxu0 %v59
    %67 = vmatpush.xpose.msra.mxu0 %v58
    %68 = vmatpush.xpose.msra.mxu0 %v57
    %69 = vmatpush.xpose.msra.mxu0 %v56
    %70 = vmatpush.xpose.msra.mxu0 %v55
    %71 = vmatpush.xpose.msra.mxu0 %v54
    %72 = vmatpush.xpose.msra.mxu0 %v53
    %73 = vmatpush.xpose.msra.mxu0 %v52
    %74 = vmatpush.xpose.msra.mxu0 %v51
    %75 = vmatpush.xpose.msra.mxu0 %v50
    %76 = vmatpush.xpose.msra.mxu0 %v49
    %77 = vmatpush.xpose.msra.mxu0 %v48
    %78 = vmatpush.xpose.msra.mxu0 %v47
    %79 = vmatmul.f32.gmra.mxu0 %v46
    %v80 = vpop.f32.mrf.mxu0
    %v81 = vadd.f32 0.0, %v80
    %82 = vdwg.mxu0
    %p83 = scmp.eq.s32.totalorder 0, 0
    // Predicated region
    $region22: #{tpu_custom_call.1} parent=1 // pred_check
      %p84 = pneg %p83
    $region23: #{tpu_custom_call.1} parent=1 // pred_check_branch
      %86 = sbr.rel (%p84) target = $region25
    $region24: #{tpu_custom_call.1} parent=1 // pred_region
      %87 = vst [vmem:[#allocation2] sm:$0xff] %v81
    $region25: #{tpu_custom_call.1} parent=1 // pred_fallthru
      _
    %p88 = scmp.gt.s32.totalorder 0, 0
    // Predicated region
    $region26: #{tpu_custom_call.1} parent=1 // pred_check
      %p89 = pneg %p88
    $region27: #{tpu_custom_call.1} parent=1 // pred_check_branch
      %91 = sbr.rel (%p89) target = $region29
    $region28: #{tpu_custom_call.1} parent=1 // pred_region
      %v92 = vld [vmem:[#allocation2] sm:$0xff]
      %v93 = vadd.f32 %v92, %v81
      %94 = vst [vmem:[#allocation2] sm:$0xff] %v93
    $region29: #{tpu_custom_call.1} parent=1 // pred_fallthru
      _
    // Predicated region
    $region30: #{tpu_custom_call.1} parent=1 // pred_check
      %p95 = pneg %p83
    $region31: #{tpu_custom_call.1} parent=1 // pred_check_branch
      %97 = sbr.rel (%p95) target = $region33
    $region32: #{tpu_custom_call.1} parent=1 // pred_region
      %v98 = vld [vmem:[#allocation2] sm:$0xff]
      %v99 = vld [vmem:[%s2] sm:$0x1]
      %v101 = vperm.slane %v99, 0
      %v103 = vadd.f32 %v98, %v101
      %104 = vst [vmem:[#allocation8] sm:$0xff] %v103
    $region33: #{tpu_custom_call.1} parent=1 // pred_fallthru
      _
    // Predicated region
    $region34: #{tpu_custom_call.1} parent=1 // pred_check
      _
    $region35: #{tpu_custom_call.1} parent=1 // pred_check_branch
      %106 = sbr.rel (0) target = $region37
    $region36: #{tpu_custom_call.1} parent=1 // pred_region
      %108 = vsyncadd [#allocation5], 0
      %s110 = sshll.u32 [#allocation8], 4
      %s111 = int_to_ptr.vmem [resolvable:$true] %s110
      %s112 = sshll.u32 %s3, 4
      %s113 = int_to_ptr.hbm [resolvable:$true] %s112
      %115 = dma.vmem_to_hbm [thread:$0]  %s111, 128, %s113, [#allocation5]
    $region37: #{tpu_custom_call.1} parent=1 // pred_fallthru
      _
    // Predicated region
    $region38: #{tpu_custom_call.1} parent=1 // pred_check
      _
    $region39: #{tpu_custom_call.1} parent=1 // pred_check_branch
      %117 = sbr.rel (0) target = $region41
    $region40: #{tpu_custom_call.1} parent=1 // pred_region
      %119 = dma.done [#allocation5], 128
    $region41: #{tpu_custom_call.1} parent=1 // pred_fallthru
      _
    %120 = vsyncpa [#allocation4], 1
    %121 = vsyncpa [#allocation7], 1
    %122 = vsyncpa [#allocation5], 1

</llo_original>
